<compile_context>
chip_gen: v7x
topology: tpu7x:2x2x1
jax: 0.10.0
libtpu: 0.0.40
codegen_flags: <defaults>
</compile_context>

<pallas_src>
import functools

import jax
import jax.numpy as jnp
from jax.experimental import pallas as pl
from jax.experimental.pallas import tpu as pltpu


def _round_up(x, m):
    return ((x + m - 1) // m) * m


def _cross_entropy_rows(logits_ref, tgt_ref, nll_ref):
    """Per-row NLL = logsumexp(logits) - logits[target], written to nll_ref."""
    logits = logits_ref[...].astype(jnp.float32)           # (tile_n, V)
    tile_n, v = logits.shape
    m = jnp.max(logits, axis=-1, keepdims=True)
    lse = m + jnp.log(jnp.sum(jnp.exp(logits - m), axis=-1, keepdims=True))
    col = jax.lax.broadcasted_iota(jnp.int32, (tile_n, v), 1)
    tgt = tgt_ref[...]                                      # (tile_n, 1) int32
    # TODO(synk): extract the target logit via scalar indexing during the gather
    # (saves one full-width select + row reduce) once the memory path is fixed.
    tgt_logit = jnp.sum(jnp.where(col == tgt, logits, 0.0),
                        axis=-1, keepdims=True)
    nll_ref[...] = (lse - tgt_logit).astype(nll_ref.dtype)


def _bigram_resident_kernel(tile_n, with_loss, *refs):
    """Fast path: embedding table resident in VMEM, in-VMEM row gather."""
    if with_loss:
        idx_ref, tgt_ref, emb_ref, logits_ref, nll_ref = refs
    else:
        idx_ref, emb_ref, logits_ref = refs
        tgt_ref = nll_ref = None

    base = pl.program_id(0) * tile_n

    # Row gather: dynamic-index VMEM reads stored straight into the pipelined
    # output block (no staging buffer, no per-row HBM DMA).
    @pl.loop(0, tile_n)
    def _(r):
        tok = idx_ref[base + r]
        logits_ref[pl.ds(r, 1), :] = emb_ref[pl.ds(tok, 1), :]

    if with_loss:
        _cross_entropy_rows(logits_ref, tgt_ref, nll_ref)


def _bigram_hbm_gather_kernel(tile_n, with_loss, *refs):
    """Large-vocab path: table stays in HBM; gathered rows are DMA'd directly
    into the pipelined logits output block (no staging scratch)."""
    if with_loss:
        idx_ref, tgt_ref, emb_hbm, logits_ref, nll_ref, sem = refs
    else:
        idx_ref, emb_hbm, logits_ref, sem = refs
        tgt_ref = nll_ref = None

    base = pl.program_id(0) * tile_n

    # TODO(synk): double-buffer this gather across grid steps (prefetch tile
    # i+1's rows while tile i computes/stores) to hide HBM gather latency.
    @pl.loop(0, tile_n)
    def _(r):
        tok = idx_ref[base + r]
        pltpu.make_async_copy(emb_hbm.at[pl.ds(tok, 1)],
                              logits_ref.at[pl.ds(r, 1)],
                              sem.at[r]).start()

    @pl.loop(0, tile_n)
    def _(r):
        tok = idx_ref[base + r]  # rebuild the exact descriptor the copy used
        pltpu.make_async_copy(emb_hbm.at[pl.ds(tok, 1)],
                              logits_ref.at[pl.ds(r, 1)],
                              sem.at[r]).wait()

    if with_loss:
        _cross_entropy_rows(logits_ref, tgt_ref, nll_ref)


def bigram_forward(inputs, emb_table, targets=None):
    """Forward pass of BigramModel. Returns (logits[B,T,V], loss or None)."""
    B, T = inputs.shape
    V = emb_table.shape[0]
    n = B * T
    with_loss = targets is not None

    # Generation-aware scoped-VMEM budget (v7x: 64 MiB physical -> ~40 MiB,
    # v5e/v6e: 128 MiB physical -> 48 MiB).
    try:
        vmem_cap = int(pltpu.get_tpu_info().vmem_capacity_bytes)
    except Exception:
        vmem_cap = 64 * 1024 * 1024
    vmem_limit = int(min(48 * 1024 * 1024, (vmem_cap * 5) // 8))

    itemsize = jnp.dtype(emb_table.dtype).itemsize
    row_bytes = V * itemsize
    table_bytes = V * row_bytes
    # Fast path when the (possibly double-buffered) table uses <= half the budget.
    fast_path = 2 * table_bytes <= vmem_limit // 2

    # Row tile: multiple of 8, divides npad, sized so the double-buffered
    # (tile_n, V) output block fits the remaining VMEM budget, and capped so
    # there are >= 2 grid steps (both v7x TensorCores get work).
    out_budget = vmem_limit - (2 * table_bytes if fast_path else 0)
    cap_rows = max(8, min(1024, ((max(out_budget, 0) // (2 * row_bytes)) // 8) * 8))
    npad0 = _round_up(n, 8)
    tile_n = min(cap_rows, npad0)
    if npad0 >= 16:
        tile_n = min(tile_n, _round_up(pl.cdiv(npad0, 2), 8))
    npad = _round_up(n, tile_n)
    num_tiles = npad // tile_n

    # Flattened, padded token ids (scalar-prefetched into SMEM for the gather).
    idx_flat = jnp.zeros((npad,), jnp.int32).at[:n].set(
        inputs.reshape(-1).astype(jnp.int32))

    logits_spec = pl.BlockSpec((tile_n, V), lambda i, idx: (i, 0))
    if fast_path:
        kern = _bigram_resident_kernel
        emb_spec = pl.BlockSpec((V, V), lambda i, idx: (0, 0))   # VMEM-resident
        scratch = []
    else:
        kern = _bigram_hbm_gather_kernel
        emb_spec = pl.BlockSpec(memory_space=pl.ANY)             # stays in HBM
        scratch = [pltpu.SemaphoreType.DMA((tile_n,))]

    kernel = functools.partial(kern, tile_n, with_loss)
    cparams = pltpu.CompilerParams(dimension_semantics=("parallel",),
                                   vmem_limit_bytes=vmem_limit)

    # TODO(synk): a loss-only mode (skip the logits HBM writeback) would halve
    # HBM traffic on the training path; the nn.Module contract returns logits.
    if with_loss:
        tgt_col = jnp.zeros((npad, 1), jnp.int32).at[:n, 0].set(
            targets.reshape(-1).astype(jnp.int32))
        logits_flat, nll = pl.pallas_call(
            kernel,
            out_shape=(jax.ShapeDtypeStruct((npad, V), emb_table.dtype),
                       jax.ShapeDtypeStruct((npad, 1), jnp.float32)),
            grid_spec=pltpu.PrefetchScalarGridSpec(
                num_scalar_prefetch=1,
                grid=(num_tiles,),
                in_specs=[pl.BlockSpec((tile_n, 1), lambda i, idx: (i, 0)),
                          emb_spec],
                out_specs=(logits_spec,
                           pl.BlockSpec((tile_n, 1), lambda i, idx: (i, 0))),
                scratch_shapes=scratch),
            compiler_params=cparams,
        )(idx_flat, tgt_col, emb_table)
        loss = jnp.sum(nll[:n, 0]) / jnp.float32(n)
    else:
        logits_flat = pl.pallas_call(
            kernel,
            out_shape=jax.ShapeDtypeStruct((npad, V), emb_table.dtype),
            grid_spec=pltpu.PrefetchScalarGridSpec(
                num_scalar_prefetch=1,
                grid=(num_tiles,),
                in_specs=[emb_spec],
                out_specs=logits_spec,
                scratch_shapes=scratch),
            compiler_params=cparams,
        )(idx_flat, emb_table)
        loss = None

    logits = logits_flat[:n].reshape(B, T, V)   # prefix view, no column slice
    return logits, loss


if __name__ == "__main__":
    key = jax.random.PRNGKey(0)
    k_emb, k_idx, k_tgt = jax.random.split(key, 3)

    VOCAB = 128
    B, T = 2, 8

    # nn.Embedding default init: N(0, 1)
    emb_table = jax.random.normal(k_emb, (VOCAB, VOCAB), dtype=jnp.float32)
    inputs = jax.random.randint(k_idx, (B, T), 0, VOCAB, dtype=jnp.int32)
    targets = jax.random.randint(k_tgt, (B, T), 0, VOCAB, dtype=jnp.int32)

    logits, loss = bigram_forward(inputs, emb_table, targets)
    logits, loss = jax.block_until_ready((logits, loss))

    # Pure-JAX reference check.
    ref_logits = emb_table[inputs]                                    # (B, T, V)
    flat = ref_logits.reshape(-1, VOCAB)
    lse = jax.nn.logsumexp(flat, axis=-1)
    nll_ref = lse - flat[jnp.arange(B * T), targets.reshape(-1)]
    ref_loss = jnp.mean(nll_ref)

    assert jnp.allclose(logits, ref_logits, atol=1e-5, rtol=1e-5)
    assert jnp.allclose(loss, ref_loss, atol=1e-5, rtol=1e-5)

    # targets=None path (logits only, loss is None) -- skips the CE work.
    logits_only, loss_none = bigram_forward(inputs, emb_table, None)
    jax.block_until_ready(logits_only)
    assert loss_none is None
    assert jnp.allclose(logits_only, ref_logits, atol=1e-5, rtol=1e-5)

    print("KERNEL_OK")
</pallas_src>

<mosaic_0001>
module attributes {stable_mosaic.version = 11 : i64} {
  func.func @_bigram_resident_kernel(%arg0: i32, %arg1: memref<16xi32, #tpu.memory_space<smem>>, %arg2: memref<8x1xi32, #tpu.memory_space<vmem>>, %arg3: memref<128x128xf32, #tpu.memory_space<vmem>>, %arg4: memref<8x128xf32, #tpu.memory_space<vmem>>, %arg5: memref<8x1xf32, #tpu.memory_space<vmem>>) attributes {dimension_semantics = [#tpu.dimension_semantics<parallel>], iteration_bounds = array<i64: 2>, scalar_prefetch = 1 : i64, scratch_operands = 0 : i64, tpu.core_type = #tpu.core_type<tc>, window_params = [{transform_indices = @transform_0, window_bounds = array<i64: 8, 1>}, {pipeline_mode = #tpu.pipeline_mode<synchronous>, transform_indices = @transform_1, window_bounds = array<i64: 128, 128>}, {transform_indices = @transform_2, window_bounds = array<i64: 8, 128>}, {transform_indices = @transform_3, window_bounds = array<i64: 8, 1>}]} {
    %c8_i32 = arith.constant 8 : i32
    %0 = arith.muli %arg0, %c8_i32 : i32
    %c0_i32 = arith.constant 0 : i32
    %c8_i32_0 = arith.constant 8 : i32
    %1 = arith.addi %c0_i32, %c8_i32_0 : i32
    %c1_i32 = arith.constant 1 : i32
    scf.for %arg6 = %c0_i32 to %1 step %c1_i32  : i32 {
      %c1_i32_10 = arith.constant 1 : i32
      %22 = arith.muli %arg6, %c1_i32_10 : i32
      %c0_i32_11 = arith.constant 0 : i32
      %23 = arith.addi %c0_i32_11, %22 : i32
      %24 = arith.addi %0, %23 : i32
      %25 = arith.index_cast %24 : i32 to index
      %26 = memref.load %arg1[%25] : memref<16xi32, #tpu.memory_space<smem>>
      %27 = arith.index_cast %26 : i32 to index
      %c0_12 = arith.constant 0 : index
      %28 = vector.load %arg3[%27, %c0_12] : memref<128x128xf32, #tpu.memory_space<vmem>>, vector<1x128xf32>
      %29 = arith.index_cast %23 : i32 to index
      %c0_13 = arith.constant 0 : index
      %30 = vector.load %arg4[%29, %c0_13] : memref<8x128xf32, #tpu.memory_space<vmem>>, vector<1x128xf32>
      tpu.vector_store %arg4[%29, %c0_13], %28 {strides = array<i32>} : memref<8x128xf32, #tpu.memory_space<vmem>>, vector<1x128xf32>,
    }
    %c8_i32_1 = arith.constant 8 : i32
    %c0 = arith.constant 0 : index
    %c0_2 = arith.constant 0 : index
    %2 = vector.load %arg4[%c0, %c0_2] : memref<8x128xf32, #tpu.memory_space<vmem>>, vector<8x128xf32>
    %cst = arith.constant dense<0xFF800000> : vector<8xf32>
    %3 = vector.multi_reduction <maximumf>, %2, %cst [1] : vector<8x128xf32> to vector<8xf32>
    %4 = vector.shape_cast %3 : vector<8xf32> to vector<8x1xf32>
    %5 = vector.broadcast %4 : vector<8x1xf32> to vector<8x128xf32>
    %6 = arith.subf %2, %5 : vector<8x128xf32>
    %7 = math.exp %6 : vector<8x128xf32>
    %cst_3 = arith.constant dense<0.000000e+00> : vector<8xf32>
    %8 = vector.multi_reduction <add>, %7, %cst_3 [1] : vector<8x128xf32> to vector<8xf32>
    %9 = vector.shape_cast %8 : vector<8xf32> to vector<8x1xf32>
    %10 = math.log %9 : vector<8x1xf32>
    %11 = arith.addf %4, %10 : vector<8x1xf32>
    %12 = tpu.iota {dimensions = array<i32: 1>} : vector<8x128xi32>
    %c0_4 = arith.constant 0 : index
    %c0_5 = arith.constant 0 : index
    %13 = vector.load %arg2[%c0_4, %c0_5] : memref<8x1xi32, #tpu.memory_space<vmem>>, vector<8x1xi32>
    %14 = vector.broadcast %13 : vector<8x1xi32> to vector<8x128xi32>
    %15 = arith.cmpi eq, %12, %14 : vector<8x128xi32>
    %cst_6 = arith.constant 0.000000e+00 : f32
    %16 = vector.broadcast %cst_6 : f32 to vector<8x128xf32>
    %17 = arith.select %15, %2, %16 : vector<8x128xi1>, vector<8x128xf32>
    %cst_7 = arith.constant dense<0.000000e+00> : vector<8xf32>
    %18 = vector.multi_reduction <add>, %17, %cst_7 [1] : vector<8x128xf32> to vector<8xf32>
    %19 = vector.shape_cast %18 : vector<8xf32> to vector<8x1xf32>
    %20 = arith.subf %11, %19 : vector<8x1xf32>
    %c0_8 = arith.constant 0 : index
    %c0_9 = arith.constant 0 : index
    %21 = vector.load %arg5[%c0_8, %c0_9] : memref<8x1xf32, #tpu.memory_space<vmem>>, vector<8x1xf32>
    tpu.vector_store %arg5[%c0_8, %c0_9], %20 {strides = array<i32>} : memref<8x1xf32, #tpu.memory_space<vmem>>, vector<8x1xf32>,
    return
  }
  func.func @transform_0(%arg0: i32, %arg1: memref<16xi32, #tpu.memory_space<smem>>) -> (i32, i32) {
    %c0_i32 = arith.constant 0 : i32
    %c0_i32_0 = arith.constant 0 : i32
    return %arg0, %c0_i32 : i32, i32
  }
  func.func @transform_1(%arg0: i32, %arg1: memref<16xi32, #tpu.memory_space<smem>>) -> (i32, i32) {
    %c0_i32 = arith.constant 0 : i32
    %c0_i32_0 = arith.constant 0 : i32
    %c0_i32_1 = arith.constant 0 : i32
    return %c0_i32, %c0_i32_0 : i32, i32
  }
  func.func @transform_2(%arg0: i32, %arg1: memref<16xi32, #tpu.memory_space<smem>>) -> (i32, i32) {
    %c0_i32 = arith.constant 0 : i32
    %c0_i32_0 = arith.constant 0 : i32
    return %arg0, %c0_i32 : i32, i32
  }
  func.func @transform_3(%arg0: i32, %arg1: memref<16xi32, #tpu.memory_space<smem>>) -> (i32, i32) {
    %c0_i32 = arith.constant 0 : i32
    %c0_i32_0 = arith.constant 0 : i32
    return %arg0, %c0_i32 : i32, i32
  }
}

</mosaic_0001>

<llo_original>
// kernel: tpu_custom_call.1
$region0: #{tpu_custom_call.1}
  #allocation0 [shape = 'u32[]', space=smem, size = 0x4, offset = 0x4, fixed_abs, tag = 'smem constant byte address 0x4 - core index']
  #allocation1 [shape = 'u32[144,128]{1,0:T(1,128)}', space=vmem, size = 0x12000, scoped, tag = 'internal scratch']
  #allocation2 [shape = 's32[1]{0}', space=sflag, size = 0x4, scoped, tag = 'scoped memory for tpu_custom_call.1']
  #allocation3 [shape = 'u8[512]{0}', space=smem, size = 0x200, scoped, tag = 'prefetched SMEM operand 0']
  %s0 = inlined_call_operand.vmem [shape: s32[16], index: 0, kind: input, shape index: {}]
  %s1 = inlined_call_operand.vmem [shape: s32[16,1], index: 1, kind: input, shape index: {}]
  %s2 = inlined_call_operand.hbm [shape: f32[128,128], index: 2, kind: input, shape index: {}]
  %s3 = inlined_call_operand.hbm [shape: f32[16,128], index: 3, kind: output, shape index: {0}]
  %s4 = inlined_call_operand.vmem [shape: f32[16,1], index: 4, kind: output, shape index: {1}]
  %5 = xla_tuple %s3, %s4
  %s6 = sld [smem:[#allocation0]]
  $region60: #{tpu_custom_call.1} parent=0
    _
  %s8 = ssub.s32 1, %s6
  %s9 = scalar_select 0, %s8, %s6
  %s10 = sshll.u32 %s0, 4
  %s11 = int_to_ptr.vmem [resolvable:$true] %s10
  %13 = dma.vmem_to_smem %s11, 16, [#allocation3], [#allocation2]
  %14 = dma.done [#allocation2], 16
  %15 = sfence
  $region1: #{tpu_custom_call.1} parent=0
    #allocation4 [shape = 'u8[65536]{0}', space=vmem, size = 0x10000, scoped, tag = 'input window, operand 2, single buffered']
    #allocation5 [shape = 's32[2]{0}', space=sflag, size = 0x8, scoped, tag = 'scoped memory for tpu_custom_call.1']
    #allocation6 [shape = 's32[2]{0}', space=sflag, size = 0x8, scoped, tag = 'scoped memory for tpu_custom_call.1']
    #allocation7 [shape = 'u8[8192]{0}', space=vmem, size = 0x2000, scoped, tag = 'output window, operand 0']
    %16 = vsyncpa [#allocation5], 0
    %17 = vsyncpa [#allocation6], 0
    %s18 = scalar_lea.sflag [#allocation6], 1
    %19 = vsyncpa %s18, 0
    loop: start=0, step=1, limit=4
    $region2: #{tpu_custom_call.1} parent=1 // loop_pre_header
      _
    $region3: #{tpu_custom_call.1} parent=1 // loop_header
      %s21 = sphi 0, %s25
      %p22 = scmp.ge.s32.totalorder %s21, 4
      %s31 = sphi 0, %s33
      %s34 = sphi 0, %s31
      %s35 = sphi 0, %s34
      %s51 = sphi 0, %s35
      %s55 = sphi 0, %s55
      %s57 = sphi 0, %s55
      %s58 = sphi 0, %s57
      %s72 = sphi 0, %s58
      %s78 = sphi 0, %s80
      %s81 = sphi 0, %s78
      %s82 = sphi 0, %s81
      %s98 = sphi 0, %s82
      %s104 = sphi 0, %s106
      %s107 = sphi 0, %s104
      %s108 = sphi 0, %s107
      %s124 = sphi 0, %s108
    $region4: #{tpu_custom_call.1} parent=1 // loop_header_branch
      %24 = sbr.rel (%p22) target = $region8
    $region5: #{tpu_custom_call.1} parent=1 // loop_body
      %s26 = ssub.s32 %s21, 1
      %s27 = ssub.s32 %s21, 2
      %s28 = sadd.s32 %s21, 1
      %s29 = ssub.s32 %s21, %s28
      %p30 = scmp.eq.s32.totalorder %s29, 0
      %s32 = sadd.s32 %s31, 1
      %s33 = scalar_select %p30, %s31, %s32
      %p36 = pneg %p30
      %p37 = scmp.eq.s32.totalorder %s21, 1
      %p38 = por %p36, %p37
      %p39 = scmp.ne.s32.totalorder %s31, %s34
      %p40 = scmp.eq.s32.totalorder %s21, 0
      %p41 = por %p39, %p40
      %p42 = scmp.ne.s32.totalorder %s31, %s34
      %p43 = scmp.eq.s32.totalorder %s26, 1
      %p44 = por %p42, %p43
      %p45 = scmp.ne.s32.totalorder %s34, %s35
      %p46 = scmp.eq.s32.totalorder %s26, 0
      %p47 = por %p45, %p46
      %p48 = scmp.ne.s32.totalorder %s34, %s35
      %p49 = scmp.eq.s32.totalorder %s27, 1
      %p50 = por %p48, %p49
      %p52 = scmp.ne.s32.totalorder %s35, %s51
      %p53 = scmp.eq.s32.totalorder %s27, 0
      %p54 = por %p52, %p53
      %s56 = sadd.s32 %s55, 1
      %p59 = scmp.eq.s32.totalorder %s21, 1
      %p60 = scmp.ne.s32.totalorder %s55, %s57
      %p61 = scmp.eq.s32.totalorder %s21, 0
      %p62 = por %p60, %p61
      %p63 = scmp.ne.s32.totalorder %s55, %s57
      %p64 = scmp.eq.s32.totalorder %s26, 1
      %p65 = por %p63, %p64
      %p66 = scmp.ne.s32.totalorder %s57, %s58
      %p67 = scmp.eq.s32.totalorder %s26, 0
      %p68 = por %p66, %p67
      %p69 = scmp.ne.s32.totalorder %s57, %s58
      %p70 = scmp.eq.s32.totalorder %s27, 1
      %p71 = por %p69, %p70
      %p73 = scmp.ne.s32.totalorder %s58, %s72
      %p74 = scmp.eq.s32.totalorder %s27, 0
      %p75 = por %p73, %p74
      %s76 = ssub.s32 %s21, %s28
      %p77 = scmp.eq.s32.totalorder %s76, 0
      %s79 = sadd.s32 %s78, 1
      %s80 = scalar_select %p77, %s78, %s79
      %p83 = pneg %p77
      %p84 = scmp.eq.s32.totalorder %s21, 1
      %p85 = por %p83, %p84
      %p86 = scmp.ne.s32.totalorder %s78, %s81
      %p87 = scmp.eq.s32.totalorder %s21, 0
      %p88 = por %p86, %p87
      %p89 = scmp.ne.s32.totalorder %s78, %s81
      %p90 = scmp.eq.s32.totalorder %s26, 1
      %p91 = por %p89, %p90
      %p92 = scmp.ne.s32.totalorder %s81, %s82
      %p93 = scmp.eq.s32.totalorder %s26, 0
      %p94 = por %p92, %p93
      %p95 = scmp.ne.s32.totalorder %s81, %s82
      %p96 = scmp.eq.s32.totalorder %s27, 1
      %p97 = por %p95, %p96
      %p99 = scmp.ne.s32.totalorder %s82, %s98
      %p100 = scmp.eq.s32.totalorder %s27, 0
      %p101 = por %p99, %p100
      %s102 = ssub.s32 %s21, %s28
      %p103 = scmp.eq.s32.totalorder %s102, 0
      %s105 = sadd.s32 %s104, 1
      %s106 = scalar_select %p103, %s104, %s105
      %p109 = pneg %p103
      %p110 = scmp.eq.s32.totalorder %s21, 1
      %p111 = por %p109, %p110
      %p112 = scmp.ne.s32.totalorder %s104, %s107
      %p113 = scmp.eq.s32.totalorder %s21, 0
      %p114 = por %p112, %p113
      %p115 = scmp.ne.s32.totalorder %s104, %s107
      %p116 = scmp.eq.s32.totalorder %s26, 1
      %p117 = por %p115, %p116
      %p118 = scmp.ne.s32.totalorder %s107, %s108
      %p119 = scmp.eq.s32.totalorder %s26, 0
      %p120 = por %p118, %p119
      %p121 = scmp.ne.s32.totalorder %s107, %s108
      %p122 = scmp.eq.s32.totalorder %s27, 1
      %p123 = por %p121, %p122
      %p125 = scmp.ne.s32.totalorder %s108, %s124
      %p126 = scmp.eq.s32.totalorder %s27, 0
      %p127 = por %p125, %p126
      %p128 = scmp.le.s32.totalorder 1, %s21
      %p129 = scmp.lt.s32.totalorder %s21, 3
      %p130 = pnand %p128, %p129
      %p131 = pneg %p130
      // Predicated region
      $region9: #{tpu_custom_call.1} parent=5 // pred_check
        _
      $region10: #{tpu_custom_call.1} parent=5 // pred_check_branch
        %133 = sbr.rel (%p130) target = $region12
      $region11: #{tpu_custom_call.1} parent=5 // pred_region
        %s134 = ssub.s32 %s21, 1
        // Predicated region
        $region13: #{tpu_custom_call.1} parent=11 // pred_check
          %p135 = pneg %p68
        $region14: #{tpu_custom_call.1} parent=11 // pred_check_branch
          %137 = sbr.rel (%p135) target = $region16
        $region15: #{tpu_custom_call.1} parent=11 // pred_region
          %s139 = ssub.s32 2048, 2048
          %140 = vsyncadd [#allocation5], %s139
          %s141 = sshll.u32 [#allocation4], 4
          %s142 = int_to_ptr.vmem [resolvable:$true] %s141
          %147 = dma.hbm_to_vmem [thread:$0]  %s2, 2048, %s142, [#allocation5], 128, 128, 8
        $region16: #{tpu_custom_call.1} parent=11 // pred_fallthru
          _
      $region12: #{tpu_custom_call.1} parent=5 // pred_fallthru
        _
      %p148 = scmp.lt.s32.totalorder %s21, 2
      // Predicated region
      $region17: #{tpu_custom_call.1} parent=5 // pred_check
        %p149 = pneg %p148
      $region18: #{tpu_custom_call.1} parent=5 // pred_check_branch
        %151 = sbr.rel (%p149) target = $region20
      $region19: #{tpu_custom_call.1} parent=5 // pred_region
        // Predicated region
        $region21: #{tpu_custom_call.1} parent=19 // pred_check
          %p152 = pneg %p41
        $region22: #{tpu_custom_call.1} parent=19 // pred_check_branch
          %154 = sbr.rel (%p152) target = $region24
        $region23: #{tpu_custom_call.1} parent=19 // pred_region
          %p155 = scmp.lt.s32.totalorder %s21, 1
          %s156 = scalar_select %p155, %s21, 1
          %s157 = smul.addr %s156, 8
          %s158 = scalar_lea.vmem %s1, %s157
        $region24: #{tpu_custom_call.1} parent=19 // pred_fallthru
          _
      $region20: #{tpu_custom_call.1} parent=5 // pred_fallthru
        _
      %p159 = scmp.le.s32.totalorder 1, %s21
      %p160 = scmp.lt.s32.totalorder %s21, 3
      %p161 = pnand %p159, %p160
      %p162 = pneg %p161
      // Predicated region
      $region25: #{tpu_custom_call.1} parent=5 // pred_check
        _
      $region26: #{tpu_custom_call.1} parent=5 // pred_check_branch
        %164 = sbr.rel (%p161) target = $region28
      $region27: #{tpu_custom_call.1} parent=5 // pred_region
        %s165 = ssub.s32 %s21, 1
        // Predicated region
        $region29: #{tpu_custom_call.1} parent=27 // pred_check
          %p166 = pneg %p68
        $region30: #{tpu_custom_call.1} parent=27 // pred_check_branch
          %168 = sbr.rel (%p166) target = $region32
        $region31: #{tpu_custom_call.1} parent=27 // pred_region
          %169 = dma.done [#allocation5], 2048
        $region32: #{tpu_custom_call.1} parent=27 // pred_fallthru
          _
        %p170 = scmp.lt.s32.totalorder %s26, 1
        %s171 = scalar_select %p170, %s26, 1
        %s172 = smul.addr %s171, 8
        %s173 = scalar_lea.vmem %s1, %s172
        %p174 = pneg %p47
        %p175 = pneg %p44
        %p176 = pneg %p68
        %p177 = pneg %p65
        %p178 = pneg %p94
        %p179 = pneg %p91
        %s180 = sand.u32 %s81, 1
        %s181 = scalar_lea.sflag [#allocation6], %s180
        %s182 = sand.u32 %s81, 1
        %s183 = smul.addr %s182, 8
        %s184 = scalar_lea.vmem [#allocation7], %s183
        %p185 = pneg %p120
        %p186 = pneg %p117
        %p187 = scmp.lt.s32.totalorder %s26, 1
        %s188 = scalar_select %p187, %s26, 1
        %s189 = smul.addr %s188, 8
        %s190 = scalar_lea.vmem %s4, %s189
        %p191 = scmp.lt.s32.totalorder %s26, 1
        %s192 = scalar_select %p191, %s26, 1
        %s193 = smul.addr %s192, 8
        %s194 = scalar_lea.vmem %s1, %s193
        %p195 = scmp.lt.s32.totalorder %s26, 1
        %s196 = scalar_select %p195, %s26, 1
        %s197 = smul.addr %s196, 8
        %s198 = scalar_lea.vmem %s4, %s197
        %s199 = smul.u32 %s26, 8
        loop: start=0, step=1, limit=8
        $region33: #{tpu_custom_call.1} parent=27 // loop_pre_header
          _
        $region34: #{tpu_custom_call.1} parent=27 // loop_header
          %s201 = sphi 0, %s205
          %p202 = scmp.ge.s32.totalorder %s201, 8
        $region35: #{tpu_custom_call.1} parent=27 // loop_header_branch
          %204 = sbr.rel (%p202) target = $region39
        $region36: #{tpu_custom_call.1} parent=27 // loop_body
          %s206 = sadd.s32 %s199, %s201
          %s207 = sld [smem:[#allocation3 + %s206]]
          %s208 = scalar_lea.vmem [#allocation4], %s207
          %v209 = vld [vmem:[%s208] sm:$0x1]
          %s210 = scalar_lea.vmem %s184, %s201 [#allocation7]
          %211 = vst [vmem:[%s210] sm:$0x1] %v209
        $region37: #{tpu_custom_call.1} parent=27 // loop_footer
          %s205 = sadd.s32 1, %s201
        $region38: #{tpu_custom_call.1} parent=27 // loop_footer_branch
          %200 = sbr.rel target = $region34
        $region39: #{tpu_custom_call.1} parent=27 // loop_exit
          _
        %v212 = vld [vmem:[%s184] sm:$0xff]
        %213 = vmax.xlane.f32.xlu0 %v212
        %v214 = vpop.xlane.xlu0 %213
        %v215 = vsub.f32 %v212, %v214
        %v216 = vmul.f32 %v215, 1.442695
        %v217 = vpow.pop %v216
        %218 = vadd.xlane.f32.xlu0 %v217
        %v219 = vpop.xlane.xlu0 %218
        %v220 = vlog2.pop %v219
        %v221 = vmul.f32 %v220, 0.6931472
        %v222 = vadd.f32 %v214, %v221
        %v223 = vlaneseq
        %v224 = vand.u32 %v223, 127
        %v225 = vld [vmem:[%s194] sm:$0xff]
        %226 = vset.pattern.permute.xlu0 0
        %227 = vperm.xlu0 %226, %v225
        %v228 = vpop.permute.xlu0 %227
        %vm229 = vcmp.eq.s32.totalorder %v224, %v228
        %v230 = vsel %vm229, %v212, 0.0
        %231 = vadd.xlane.f32.xlu0 %v230
        %v232 = vpop.xlane.xlu0 %231
        %v233 = vsub.f32 %v222, %v232
        %vm234 = vcmask 7168
        %235 = vst.msk [vmem:[%s198] sm:$0xff] %vm234, %v233
        %s236 = sand.u32 %s81, 1
        %s237 = scalar_lea.sflag [#allocation6], %s236
        %s238 = sand.u32 %s81, 1
        %s239 = smul.addr %s238, 8
        %s240 = scalar_lea.vmem [#allocation7], %s239
        %p241 = scmp.lt.s32.totalorder %s26, 1
        %s242 = scalar_select %p241, %s26, 1
        %s243 = smul.addr %s242, 8
        %s244 = scalar_lea.vmem %s4, %s243
        // Predicated region
        $region40: #{tpu_custom_call.1} parent=27 // pred_check
          %p245 = pneg %p91
        $region41: #{tpu_custom_call.1} parent=27 // pred_check_branch
          %247 = sbr.rel (%p245) target = $region43
        $region42: #{tpu_custom_call.1} parent=27 // pred_region
          %s249 = ssub.s32 128, 128
          %250 = vsyncadd %s237, %s249
          %s251 = smul.addr %s26, 128
          %s252 = scalar_lea.hbm %s3, %s251
          %s254 = sshll.u32 %s240, 4
          %s255 = int_to_ptr.vmem [resolvable:$true] %s254
          %257 = dma.vmem_to_hbm [thread:$0]  %s255, 128, %s252, %s237
        $region43: #{tpu_custom_call.1} parent=27 // pred_fallthru
          _
        // Predicated region
        $region44: #{tpu_custom_call.1} parent=27 // pred_check
          %p258 = pneg %p117
        $region45: #{tpu_custom_call.1} parent=27 // pred_check_branch
          %260 = sbr.rel (%p258) target = $region47
        $region46: #{tpu_custom_call.1} parent=27 // pred_region
          _
        $region47: #{tpu_custom_call.1} parent=27 // pred_fallthru
          _
      $region28: #{tpu_custom_call.1} parent=5 // pred_fallthru
        _
      %p261 = scmp.le.s32.totalorder 2, %s21
      // Predicated region
      $region48: #{tpu_custom_call.1} parent=5 // pred_check
        %p262 = pneg %p261
      $region49: #{tpu_custom_call.1} parent=5 // pred_check_branch
        %264 = sbr.rel (%p262) target = $region51
      $region50: #{tpu_custom_call.1} parent=5 // pred_region
        %s265 = ssub.s32 %s21, 2
        // Predicated region
        $region52: #{tpu_custom_call.1} parent=50 // pred_check
          %p266 = pneg %p97
        $region53: #{tpu_custom_call.1} parent=50 // pred_check_branch
          %268 = sbr.rel (%p266) target = $region55
        $region54: #{tpu_custom_call.1} parent=50 // pred_region
          %s269 = sand.u32 %s82, 1
          %s270 = scalar_lea.sflag [#allocation6], %s269
          %s271 = sand.u32 %s82, 1
          %s272 = smul.addr %s271, 8
          %s273 = scalar_lea.vmem [#allocation7], %s272
          %274 = dma.done %s270, 128
        $region55: #{tpu_custom_call.1} parent=50 // pred_fallthru
          _
        // Predicated region
        $region56: #{tpu_custom_call.1} parent=50 // pred_check
          %p275 = pneg %p123
        $region57: #{tpu_custom_call.1} parent=50 // pred_check_branch
          %277 = sbr.rel (%p275) target = $region59
        $region58: #{tpu_custom_call.1} parent=50 // pred_region
          %p278 = scmp.lt.s32.totalorder %s27, 1
          %s279 = scalar_select %p278, %s27, 1
          %s280 = smul.addr %s279, 8
          %s281 = scalar_lea.vmem %s4, %s280
        $region59: #{tpu_custom_call.1} parent=50 // pred_fallthru
          _
      $region51: #{tpu_custom_call.1} parent=5 // pred_fallthru
        _
    $region6: #{tpu_custom_call.1} parent=1 // loop_footer
      %s25 = sadd.s32 1, %s21
    $region7: #{tpu_custom_call.1} parent=1 // loop_footer_branch
      %20 = sbr.rel target = $region3
    $region8: #{tpu_custom_call.1} parent=1 // loop_exit
      _
    %282 = vsyncpa [#allocation5], 1
    %s283 = scalar_lea.sflag [#allocation5], 1
    %284 = vsyncpa %s283, 1
    %285 = vsyncpa [#allocation6], 1
    %s286 = scalar_lea.sflag [#allocation6], 1
    %287 = vsyncpa %s286, 1

</llo_original>
